<compile_context>
chip_gen: v5e
topology: v5e:2x2
jax: 0.10.0
libtpu: 0.0.40
codegen_flags: <defaults>
</compile_context>

<pallas_src>
import functools

import jax
import jax.numpy as jnp
from jax.experimental import pallas as pl
from jax.experimental.pallas import tpu as pltpu

LANES = 128
SUBLANES = 8
_MAX_TILE_BYTES = 4 << 20  # per input, per pipeline buffer (VMEM-safe on v5e/v6e/v7x)


def _round_up(x, m):
    return (x + m - 1) // m * m


def _rmsd_fraction_kernel(p_ref, t_ref, inv_na_ref, o_ref, *, distance, n_ligs, block_l):
    i = pl.program_id(0)

    @pl.when(i == 0)
    def _():
        o_ref[...] = jnp.zeros_like(o_ref)

    p = p_ref[...].astype(jnp.float32)            # (block_l, D)
    t = t_ref[...].astype(jnp.float32)
    d = p - t
    # Per-ligand sum of squared differences over all atoms & xyz.
    # Zero-padded positions contribute exactly 0.
    ssd = jnp.sum(d * d, axis=1, keepdims=True)   # (block_l, 1)

    inv_n = inv_na_ref[...]                       # (block_l, 1) f32 (pad rows = 1.0)
    rmsd = jnp.sqrt(ssd * inv_n)

    # Mask out padded ligand rows so they never count toward the fraction.
    lig_ids = i * block_l + jax.lax.broadcasted_iota(jnp.int32, (block_l, 1), 0)
    valid = lig_ids < n_ligs
    below = jnp.where(jnp.logical_and(rmsd < jnp.float32(distance), valid),
                      jnp.float32(1.0), jnp.float32(0.0))

    o_ref[...] += jnp.sum(below)

    @pl.when(i == pl.num_programs(0) - 1)
    def _():
        o_ref[...] = o_ref[...] * jnp.float32(100.0 / n_ligs)


def _pack(coords_list, l_pad, d_pad):
    """Pack a ragged list of (n_i, 3) arrays into a zero-padded (l_pad, d_pad) matrix."""
    dtype = jnp.asarray(coords_list[0]).dtype
    rows = []
    for c in coords_list:
        flat = jnp.ravel(jnp.asarray(c))
        rows.append(jnp.pad(flat, (0, d_pad - flat.shape[0])))
    for _ in range(l_pad - len(coords_list)):
        rows.append(jnp.zeros((d_pad,), dtype=dtype))
    return jnp.stack(rows, axis=0)


def rmsd_fraction(ligs_coords_pred, ligs_coords, distance):
    """Percentage of ligands whose RMSD(pred, true) is below `distance` (Pallas)."""
    assert len(ligs_coords_pred) == len(ligs_coords) and len(ligs_coords) > 0
    n_ligs = len(ligs_coords)

    max_elems = max(int(c.shape[0]) * int(c.shape[1]) for c in ligs_coords)
    d_pad = _round_up(max_elems, LANES)

    itemsize = jnp.asarray(ligs_coords_pred[0]).dtype.itemsize
    # As many ligand rows per grid step as the VMEM budget allows (multiple of 8).
    block_l = (_MAX_TILE_BYTES // (d_pad * itemsize)) // SUBLANES * SUBLANES
    block_l = max(SUBLANES, min(block_l, 1024))
    block_l = min(block_l, _round_up(n_ligs, SUBLANES))
    l_pad = _round_up(n_ligs, block_l)
    grid = (l_pad // block_l,)

    p_mat = _pack(ligs_coords_pred, l_pad, d_pad)
    t_mat = _pack(ligs_coords, l_pad, d_pad)
    inv_n_at = jnp.asarray(
        [1.0 / float(c.shape[0]) for c in ligs_coords] + [1.0] * (l_pad - n_ligs),
        dtype=jnp.float32,
    ).reshape(l_pad, 1)

    kernel = functools.partial(
        _rmsd_fraction_kernel,
        distance=float(distance),
        n_ligs=n_ligs,
        block_l=block_l,
    )

    out = pl.pallas_call(
        kernel,
        out_shape=jax.ShapeDtypeStruct((1, 1), jnp.float32),
        grid_spec=pltpu.PrefetchScalarGridSpec(
            num_scalar_prefetch=0,
            grid=grid,
            in_specs=[
                pl.BlockSpec((block_l, d_pad), lambda i: (i, 0)),
                pl.BlockSpec((block_l, d_pad), lambda i: (i, 0)),
                pl.BlockSpec((block_l, 1), lambda i: (i, 0)),
            ],
            out_specs=pl.BlockSpec((1, 1), lambda i: (0, 0)),
        ),
        compiler_params=pltpu.CompilerParams(
            dimension_semantics=("arbitrary",),
        ),
    )(p_mat, t_mat, inv_n_at)
    return out[0, 0]


def _rmsd_fraction_ref(ligs_coords_pred, ligs_coords, distance):
    """Pure-JAX reference mirroring the PyTorch loop."""
    rmsds = jnp.stack([
        jnp.sqrt(jnp.mean(jnp.sum(
            (jnp.asarray(p, jnp.float32) - jnp.asarray(t, jnp.float32)) ** 2, axis=1)))
        for p, t in zip(ligs_coords_pred, ligs_coords)
    ])
    count = rmsds < distance
    return 100.0 * jnp.sum(count) / count.shape[0]


if __name__ == "__main__":
    key = jax.random.PRNGKey(0)
    distance = 2.0

    # Small ragged "ligands": per-ligand atom counts and noise scales chosen
    # deterministically so RMSDs land well away from the threshold.
    atom_counts = [12, 20, 7, 33, 16, 25, 41, 9, 28, 14]
    noise_scales = [0.1, 0.3, 3.0, 0.2, 5.0, 2.5, 0.15, 4.0, 0.25, 1.8]

    ligs_coords, ligs_coords_pred = [], []
    for n, s in zip(atom_counts, noise_scales):
        key, k1, k2 = jax.random.split(key, 3)
        coords = 5.0 * jax.random.normal(k1, (n, 3), dtype=jnp.float32)
        preds = coords + s * jax.random.normal(k2, (n, 3), dtype=jnp.float32)
        ligs_coords.append(coords)
        ligs_coords_pred.append(preds)

    frac = rmsd_fraction(ligs_coords_pred, ligs_coords, distance)
    jax.block_until_ready(frac)

    frac_ref = _rmsd_fraction_ref(ligs_coords_pred, ligs_coords, distance)
    assert jnp.allclose(frac, frac_ref, atol=1e-4, rtol=1e-5), (frac, frac_ref)

    print("KERNEL_OK")
</pallas_src>

<mosaic_0001>
module attributes {stable_mosaic.version = 11 : i64} {
  func.func @_rmsd_fraction_kernel(%arg0: i32, %arg1: memref<16x128xf32, #tpu.memory_space<vmem>>, %arg2: memref<16x128xf32, #tpu.memory_space<vmem>>, %arg3: memref<16x1xf32, #tpu.memory_space<vmem>>, %arg4: memref<1x1xf32, #tpu.memory_space<vmem>>) attributes {dimension_semantics = [#tpu.dimension_semantics<arbitrary>], iteration_bounds = array<i64: 1>, scalar_prefetch = 0 : i64, scratch_operands = 0 : i64, tpu.core_type = #tpu.core_type<tc>, window_params = [{transform_indices = @transform_0, window_bounds = array<i64: 16, 128>}, {transform_indices = @transform_1, window_bounds = array<i64: 16, 128>}, {transform_indices = @transform_2, window_bounds = array<i64: 16, 1>}, {pipeline_mode = #tpu.pipeline_mode<synchronous>, transform_indices = @transform_3, window_bounds = array<i64: 1, 1>}]} {
    %c0_i32 = arith.constant 0 : i32
    %0 = arith.cmpi eq, %arg0, %c0_i32 : i32
    %1 = arith.extui %0 : i1 to i32
    %c0_i32_0 = arith.constant 0 : i32
    %2 = arith.cmpi ne, %1, %c0_i32_0 : i32
    scf.if %2 {
      %cst_16 = arith.constant 0.000000e+00 : f32
      %35 = vector.broadcast %cst_16 : f32 to vector<1x1xf32>
      %c0_17 = arith.constant 0 : index
      %c0_18 = arith.constant 0 : index
      %36 = vector.load %arg4[%c0_17, %c0_18] : memref<1x1xf32, #tpu.memory_space<vmem>>, vector<1x1xf32>
      tpu.vector_store %arg4[%c0_17, %c0_18], %35 {strides = array<i32>} : memref<1x1xf32, #tpu.memory_space<vmem>>, vector<1x1xf32>,
    } else {
    }
    %c0 = arith.constant 0 : index
    %c0_1 = arith.constant 0 : index
    %3 = vector.load %arg1[%c0, %c0_1] : memref<16x128xf32, #tpu.memory_space<vmem>>, vector<16x128xf32>
    %c0_2 = arith.constant 0 : index
    %c0_3 = arith.constant 0 : index
    %4 = vector.load %arg2[%c0_2, %c0_3] : memref<16x128xf32, #tpu.memory_space<vmem>>, vector<16x128xf32>
    %5 = arith.subf %3, %4 : vector<16x128xf32>
    %6 = arith.mulf %5, %5 : vector<16x128xf32>
    %cst = arith.constant dense<0.000000e+00> : vector<16xf32>
    %7 = vector.multi_reduction <add>, %6, %cst [1] : vector<16x128xf32> to vector<16xf32>
    %8 = vector.shape_cast %7 : vector<16xf32> to vector<16x1xf32>
    %c0_4 = arith.constant 0 : index
    %c0_5 = arith.constant 0 : index
    %9 = vector.load %arg3[%c0_4, %c0_5] : memref<16x1xf32, #tpu.memory_space<vmem>>, vector<16x1xf32>
    %10 = arith.mulf %8, %9 : vector<16x1xf32>
    %11 = math.sqrt %10 : vector<16x1xf32>
    %c16_i32 = arith.constant 16 : i32
    %12 = arith.muli %arg0, %c16_i32 : i32
    %13 = tpu.iota {dimensions = array<i32: 0>} : vector<16x1xi32>
    %14 = vector.broadcast %12 : i32 to vector<16x1xi32>
    %15 = arith.addi %14, %13 : vector<16x1xi32>
    %c10_i32 = arith.constant 10 : i32
    %16 = vector.broadcast %c10_i32 : i32 to vector<16x1xi32>
    %17 = arith.cmpi slt, %15, %16 : vector<16x1xi32>
    %cst_6 = arith.constant 2.000000e+00 : f32
    %18 = vector.broadcast %cst_6 : f32 to vector<16x1xf32>
    %19 = arith.cmpf olt, %11, %18 : vector<16x1xf32>
    %20 = arith.andi %19, %17 : vector<16x1xi1>
    %cst_7 = arith.constant 1.000000e+00 : f32
    %cst_8 = arith.constant 0.000000e+00 : f32
    %21 = vector.broadcast %cst_7 : f32 to vector<16x1xf32>
    %22 = vector.broadcast %cst_8 : f32 to vector<16x1xf32>
    %23 = arith.select %20, %21, %22 : vector<16x1xi1>, vector<16x1xf32>
    %c0_9 = arith.constant 0 : index
    %c0_10 = arith.constant 0 : index
    %24 = vector.load %arg4[%c0_9, %c0_10] : memref<1x1xf32, #tpu.memory_space<vmem>>, vector<1x1xf32>
    %25 = vector.shape_cast %23 : vector<16x1xf32> to vector<1x16x1xf32>
    %cst_11 = arith.constant dense<0.000000e+00> : vector<1xf32>
    %26 = vector.multi_reduction <add>, %25, %cst_11 [1, 2] : vector<1x16x1xf32> to vector<1xf32>
    %27 = vector.shape_cast %26 : vector<1xf32> to vector<1x1x1xf32>
    %28 = vector.extract %27[0, 0, 0] : f32 from vector<1x1x1xf32>
    %29 = vector.broadcast %28 : f32 to vector<1x1xf32>
    %30 = arith.addf %24, %29 : vector<1x1xf32>
    %c0_12 = arith.constant 0 : index
    %c0_13 = arith.constant 0 : index
    %31 = vector.load %arg4[%c0_12, %c0_13] : memref<1x1xf32, #tpu.memory_space<vmem>>, vector<1x1xf32>
    tpu.vector_store %arg4[%c0_12, %c0_13], %30 {strides = array<i32>} : memref<1x1xf32, #tpu.memory_space<vmem>>, vector<1x1xf32>,
    %c0_i32_14 = arith.constant 0 : i32
    %32 = arith.cmpi eq, %arg0, %c0_i32_14 : i32
    %33 = arith.extui %32 : i1 to i32
    %c0_i32_15 = arith.constant 0 : i32
    %34 = arith.cmpi ne, %33, %c0_i32_15 : i32
    scf.if %34 {
      %c0_16 = arith.constant 0 : index
      %c0_17 = arith.constant 0 : index
      %35 = vector.load %arg4[%c0_16, %c0_17] : memref<1x1xf32, #tpu.memory_space<vmem>>, vector<1x1xf32>
      %cst_18 = arith.constant 1.000000e+01 : f32
      %36 = vector.broadcast %cst_18 : f32 to vector<1x1xf32>
      %37 = arith.mulf %35, %36 : vector<1x1xf32>
      %c0_19 = arith.constant 0 : index
      %c0_20 = arith.constant 0 : index
      %38 = vector.load %arg4[%c0_19, %c0_20] : memref<1x1xf32, #tpu.memory_space<vmem>>, vector<1x1xf32>
      tpu.vector_store %arg4[%c0_19, %c0_20], %37 {strides = array<i32>} : memref<1x1xf32, #tpu.memory_space<vmem>>, vector<1x1xf32>,
    } else {
    }
    return
  }
  func.func @transform_0(%arg0: i32) -> (i32, i32) {
    %c0_i32 = arith.constant 0 : i32
    %c0_i32_0 = arith.constant 0 : i32
    return %arg0, %c0_i32 : i32, i32
  }
  func.func @transform_1(%arg0: i32) -> (i32, i32) {
    %c0_i32 = arith.constant 0 : i32
    %c0_i32_0 = arith.constant 0 : i32
    return %arg0, %c0_i32 : i32, i32
  }
  func.func @transform_2(%arg0: i32) -> (i32, i32) {
    %c0_i32 = arith.constant 0 : i32
    %c0_i32_0 = arith.constant 0 : i32
    return %arg0, %c0_i32 : i32, i32
  }
  func.func @transform_3(%arg0: i32) -> (i32, i32) {
    %c0_i32 = arith.constant 0 : i32
    %c0_i32_0 = arith.constant 0 : i32
    %c0_i32_1 = arith.constant 0 : i32
    return %c0_i32, %c0_i32_0 : i32, i32
  }
}

</mosaic_0001>

<llo_original>
// kernel: tpu_custom_call.1
$region0: #{tpu_custom_call.1}
  #allocation0 [shape = 'u32[]', space=smem, size = 0x4, offset = 0x4, fixed_abs, tag = 'smem constant byte address 0x4 - core index']
  #allocation1 [shape = 'u32[72,128]{1,0:T(1,128)}', space=vmem, size = 0x9000, scoped, tag = 'internal scratch']
  %s0 = inlined_call_operand.vmem [shape: f32[16,128], index: 0, kind: input, shape index: {}]
  %s1 = inlined_call_operand.hbm [shape: f32[16,128], index: 1, kind: input, shape index: {}]
  %s2 = inlined_call_operand.vmem [shape: f32[16,1], index: 2, kind: input, shape index: {}]
  %s3 = inlined_call_operand.hbm [shape: f32[1,1], index: 3, kind: output, shape index: {}]
  %s4 = sld [smem:[#allocation0]]
  $region34: #{tpu_custom_call.1} parent=0
    _
  %s6 = ssub.s32 1, %s4
  %s7 = scalar_select 0, %s6, %s4
  $region1: #{tpu_custom_call.1} parent=0
    #allocation2 [shape = 'u8[8192]{0}', space=vmem, size = 0x2000, scoped, tag = 'input window, operand 1, single buffered']
    #allocation3 [shape = 's32[1]{0}', space=sflag, size = 0x4, scoped, tag = 'scoped memory for tpu_custom_call.1']
    #allocation4 [shape = 's32[1]{0}', space=sflag, size = 0x4, scoped, tag = 'scoped memory for tpu_custom_call.1']
    #allocation5 [shape = 'u8[512]{0}', space=vmem, size = 0x400, scoped, tag = 'output window, operand 0, single buffered']
    %8 = vsyncpa [#allocation3], 0
    %9 = vsyncpa [#allocation4], 0
    // Predicated region
    $region2: #{tpu_custom_call.1} parent=1 // pred_check
      _
    $region3: #{tpu_custom_call.1} parent=1 // pred_check_branch
      %11 = sbr.rel (0) target = $region5
    $region4: #{tpu_custom_call.1} parent=1 // pred_region
      _
    $region5: #{tpu_custom_call.1} parent=1 // pred_fallthru
      _
    // Predicated region
    $region6: #{tpu_custom_call.1} parent=1 // pred_check
      _
    $region7: #{tpu_custom_call.1} parent=1 // pred_check_branch
      %13 = sbr.rel (0) target = $region9
    $region8: #{tpu_custom_call.1} parent=1 // pred_region
      %15 = vsyncadd [#allocation3], 0
      %s16 = sshll.u32 %s1, 4
      %s17 = int_to_ptr.hbm [resolvable:$true] %s16
      %s18 = sshll.u32 [#allocation2], 4
      %s19 = int_to_ptr.vmem [resolvable:$true] %s18
      %24 = dma.hbm_to_vmem [thread:$0]  %s17, 256, %s19, [#allocation3], 128, 128, 8
    $region9: #{tpu_custom_call.1} parent=1 // pred_fallthru
      _
    // Predicated region
    $region10: #{tpu_custom_call.1} parent=1 // pred_check
      _
    $region11: #{tpu_custom_call.1} parent=1 // pred_check_branch
      %26 = sbr.rel (0) target = $region13
    $region12: #{tpu_custom_call.1} parent=1 // pred_region
      _
    $region13: #{tpu_custom_call.1} parent=1 // pred_fallthru
      _
    // Predicated region
    $region14: #{tpu_custom_call.1} parent=1 // pred_check
      _
    $region15: #{tpu_custom_call.1} parent=1 // pred_check_branch
      %28 = sbr.rel (0) target = $region17
    $region16: #{tpu_custom_call.1} parent=1 // pred_region
      %30 = dma.done [#allocation3], 256
    $region17: #{tpu_custom_call.1} parent=1 // pred_fallthru
      _
    %p31 = scmp.eq.s32.totalorder 0, 0
    // Predicated region
    $region18: #{tpu_custom_call.1} parent=1 // pred_check
      %p32 = pneg %p31
    $region19: #{tpu_custom_call.1} parent=1 // pred_check_branch
      %34 = sbr.rel (%p32) target = $region21
    $region20: #{tpu_custom_call.1} parent=1 // pred_region
      %vm35 = vcmask 0
      %36 = vst.msk [vmem:[#allocation5] sm:$0x1] %vm35, 0.0
    $region21: #{tpu_custom_call.1} parent=1 // pred_fallthru
      _
    %v37 = vld [vmem:[%s0] sm:$0xff]
    %v38 = vld [vmem:[%s0 + $0x8] sm:$0xff]
    %v39 = vld [vmem:[#allocation2] sm:$0xff]
    %v40 = vld [vmem:[#allocation2 + $0x8] sm:$0xff]
    %v41 = vsub.f32 %v37, %v39
    %v42 = vsub.f32 %v38, %v40
    %v43 = vmul.f32 %v41, %v41
    %v44 = vmul.f32 %v42, %v42
    %45 = vadd.xlane.f32.xlu0 %v43
    %v46 = vpop.xlane.xlu0 %45
    %47 = vadd.xlane.f32.xlu0 %v44
    %v48 = vpop.xlane.xlu0 %47
    %v49 = vld [vmem:[%s2] sm:$0xff]
    %v50 = vld [vmem:[%s2 + $0x8] sm:$0xff]
    %v51 = vmul.f32 %v46, %v49
    %v52 = vmul.f32 %v48, %v50
    %v53 = vrsqrt.pop %v51
    %v54 = vmul.f32 %v53, %v51
    %v55 = vmul.f32 %v54, %v53
    %v56 = vmul.f32 0.5, %v55
    %v57 = vsub.f32 1.5, %v56
    %v58 = vmul.f32 %v53, %v57
    %v59 = vmul.f32 %v51, %v58
    %vm60 = vcmp.eq.f32.partialorder %v51, inf
    %v61 = vsel %vm60, %v51, %v59
    %vm62 = vcmp.eq.f32.partialorder %v51, 0.0
    %v63 = vand.u32 %v51, 2147483648
    %v64 = vsel %vm62, %v63, %v61
    %v65 = vrsqrt.pop %v52
    %v66 = vmul.f32 %v65, %v52
    %v67 = vmul.f32 %v66, %v65
    %v68 = vmul.f32 0.5, %v67
    %v69 = vsub.f32 1.5, %v68
    %v70 = vmul.f32 %v65, %v69
    %v71 = vmul.f32 %v52, %v70
    %vm72 = vcmp.eq.f32.partialorder %v52, inf
    %v73 = vsel %vm72, %v52, %v71
    %vm74 = vcmp.eq.f32.partialorder %v52, 0.0
    %v75 = vand.u32 %v52, 2147483648
    %v76 = vsel %vm74, %v75, %v73
    %s77 = smul.u32 0, 16
    %v78 = vlaneseq
    %v79 = vshrl.u32 %v78, 7
    %v80 = vadd.s32 %v79, 8
    %v81 = vstv %s77
    %v82 = vadd.s32 %v81, %v79
    %v83 = vadd.s32 %v81, %v80
    %vm84 = vcmp.lt.s32.totalorder %v82, 10
    %vm85 = vcmp.lt.s32.totalorder %v83, 10
    %vm86 = vcmp.lt.f32.partialorder %v64, 2.0
    %vm87 = vcmp.lt.f32.partialorder %v76, 2.0
    %vm88 = vmand %vm86, %vm84
    %vm89 = vmand %vm87, %vm85
    %v90 = vsel %vm88, 1.0, 0.0
    %v91 = vsel %vm89, 1.0, 0.0
    %v92 = vld [vmem:[#allocation5] sm:$0x1]
    %vm93 = vcmask 7168
    %v94 = vsel %vm93, %v90, 0.0
    %v95 = vsel %vm93, %v91, 0.0
    %v96 = vadd.f32 %v94, %v95
    %97 = vadd.xlane.f32.xlu0 %v96
    %v98 = vpop.xlane.xlu0 %97
    %v99 = vrot.slane %v98, 4
    %v100 = vadd.f32 %v98, %v99
    %v101 = vrot.slane %v100, 2
    %v102 = vadd.f32 %v100, %v101
    %v103 = vrot.slane %v102, 1
    %v104 = vadd.f32 %v102, %v103
    %s105 = vtos %v104
    %v106 = vstv %s105
    %v107 = vadd.f32 %v92, %v106
    %vm108 = vcmask 0
    %109 = vst.msk [vmem:[#allocation5] sm:$0x1] %vm108, %v107
    // Predicated region
    $region22: #{tpu_custom_call.1} parent=1 // pred_check
      %p110 = pneg %p31
    $region23: #{tpu_custom_call.1} parent=1 // pred_check_branch
      %112 = sbr.rel (%p110) target = $region25
    $region24: #{tpu_custom_call.1} parent=1 // pred_region
      %v113 = vld [vmem:[#allocation5] sm:$0x1]
      %v114 = vmul.f32 %v113, 10.0
      %115 = vst.msk [vmem:[#allocation5] sm:$0x1] %vm108, %v114
    $region25: #{tpu_custom_call.1} parent=1 // pred_fallthru
      _
    // Predicated region
    $region26: #{tpu_custom_call.1} parent=1 // pred_check
      _
    $region27: #{tpu_custom_call.1} parent=1 // pred_check_branch
      %117 = sbr.rel (0) target = $region29
    $region28: #{tpu_custom_call.1} parent=1 // pred_region
      %119 = vsyncadd [#allocation4], 0
      %s121 = sshll.u32 [#allocation5], 4
      %s122 = int_to_ptr.vmem [resolvable:$true] %s121
      %s123 = sshll.u32 %s3, 4
      %s124 = int_to_ptr.hbm [resolvable:$true] %s123
      %126 = dma.vmem_to_hbm [thread:$0]  %s122, 16, %s124, [#allocation4]
    $region29: #{tpu_custom_call.1} parent=1 // pred_fallthru
      _
    // Predicated region
    $region30: #{tpu_custom_call.1} parent=1 // pred_check
      _
    $region31: #{tpu_custom_call.1} parent=1 // pred_check_branch
      %128 = sbr.rel (0) target = $region33
    $region32: #{tpu_custom_call.1} parent=1 // pred_region
      %130 = dma.done [#allocation4], 16
    $region33: #{tpu_custom_call.1} parent=1 // pred_fallthru
      _
    %131 = vsyncpa [#allocation3], 1
    %132 = vsyncpa [#allocation4], 1

</llo_original>
